<compile_context>
chip_gen: v7x
topology: tpu7x:2x2x1
jax: 0.10.0
libtpu: 0.0.40
codegen_flags: <defaults>
</compile_context>

<pallas_src>
import functools

import jax
import jax.numpy as jnp
from jax.experimental import pallas as pl
from jax.experimental.pallas import tpu as pltpu


def _neuralfs_kernel(x_ref, w1_ref, b1_ref, pw_ref,
                     wd1_ref, bd1_ref, wd2_ref, bd2_ref,
                     out_ref):
    x = x_ref[...]                                          # (TB, D) f32

    # nonlinear_func: tanh(x @ W1 + b1)   (MXU dot, f32 accumulation)
    nl = jnp.tanh(
        jnp.dot(x.astype(w1_ref.dtype), w1_ref[...],
                preferred_element_type=jnp.float32) + b1_ref[...]
    )                                                       # (TB, D) f32

    # pairwise feature-selection weights (broadcast over batch)
    pc = nl * pw_ref[...]                                   # (TB, D)

    # Thresholded_Linear: ((x > 0.2) | (x < -0.2)) * x  ==  abs(x) > 0.2 ? x : 0
    thr = jnp.where(jnp.abs(pc) > 0.2, pc, jnp.zeros_like(pc))

    # selected input
    sel = x * thr                                           # (TB, D)

    # decision_net: Linear(D,Hp) -> ReLU -> Linear(Hp,Cp)  (H/C lane-padded)
    h = jnp.dot(sel.astype(wd1_ref.dtype), wd1_ref[...],
                preferred_element_type=jnp.float32) + bd1_ref[...]
    h = jnp.maximum(h, 0.0)                                 # (TB, Hp)
    out = jnp.dot(h.astype(wd2_ref.dtype), wd2_ref[...],
                  preferred_element_type=jnp.float32) + bd2_ref[...]

    out_ref[...] = out.astype(out_ref.dtype)                # (TB, Cp)


def _round_up(n, m):
    return pl.cdiv(n, m) * m


def _pad_to(a, shape):
    pads = tuple((0, t - s) for s, t in zip(a.shape, shape))
    if all(p == (0, 0) for p in pads):
        return a
    return jnp.pad(a, pads)


def neuralfs_forward(x, params, *, tile_b=256, lane_pad=128,
                     matmul_dtype=jnp.float32):
    """Fused forward pass of MultivariateSeries_NeuralFS.

    x: (B, D) float32
    params: dict with w1 (D,D), b1 (1,D), pw (1,D), wd1 (D,H), bd1 (1,H),
            wd2 (H,C), bd2 (1,C)  -- all float32.
    tile_b: batch tile (rows fed to the MXU per grid step). 256-512 suits
            v6e/v7x, 128 suffices for v5e.  Clamped for small batches.
    matmul_dtype: dtype of matmul *operands* (weights + casted activations).
            Use jnp.bfloat16 on v6e/v7x for higher MXU throughput; accumulation
            stays f32 either way.
    """
    B, D = x.shape
    H = params["wd1"].shape[1]
    C = params["wd2"].shape[1]

    # Sublane-align and clamp the batch tile, then zero-pad the batch to a
    # tile multiple (padding rows are sliced off the output; no in-kernel mask
    # needed since every op is row-independent).
    tb = int(min(tile_b, _round_up(B, 8)))
    Bp = int(_round_up(B, tb))
    xp = _pad_to(x, (Bp, D))

    # Lane-pad the small decision-net dims so both MXU matmuls and the output
    # store are full-width (zero columns/rows contribute nothing).
    Hp = int(_round_up(H, lane_pad))
    Cp = int(_round_up(C, lane_pad))

    w1 = params["w1"].astype(matmul_dtype)                      # (D, D)
    b1 = params["b1"]                                           # (1, D)  f32
    pw = params["pw"]                                           # (1, D)  f32
    wd1 = _pad_to(params["wd1"], (D, Hp)).astype(matmul_dtype)  # (D, Hp)
    bd1 = _pad_to(params["bd1"], (1, Hp))                       # (1, Hp) f32
    wd2 = _pad_to(params["wd2"], (Hp, Cp)).astype(matmul_dtype) # (Hp, Cp)
    bd2 = _pad_to(params["bd2"], (1, Cp))                       # (1, Cp) f32

    grid = (Bp // tb,)

    # Weights/biases use a constant index_map so they stay resident in VMEM
    # across grid steps.  (At large D, single-buffer them with
    # pipeline_mode=pl.Buffered(1) to halve the weight VMEM footprint.)
    def full(shape):
        return pl.BlockSpec(shape, lambda i: (0, 0))

    out = pl.pallas_call(
        _neuralfs_kernel,
        out_shape=jax.ShapeDtypeStruct((Bp, Cp), jnp.float32),
        grid=grid,
        in_specs=[
            pl.BlockSpec((tb, D), lambda i: (i, 0)),   # x tile
            full((D, D)),                              # w1
            full((1, D)),                              # b1
            full((1, D)),                              # pairwise_weights
            full((D, Hp)),                             # wd1
            full((1, Hp)),                             # bd1
            full((Hp, Cp)),                            # wd2
            full((1, Cp)),                             # bd2
        ],
        out_specs=pl.BlockSpec((tb, Cp), lambda i: (i, 0)),
        compiler_params=pltpu.CompilerParams(
            dimension_semantics=("parallel",),
            vmem_limit_bytes=64 * 1024 * 1024,
        ),
    )(xp, w1, b1, pw, wd1, bd1, wd2, bd2)

    return out[:B, :C]


def _reference_forward(x, params):
    """Pure-JAX (f32) reference of the same forward pass."""
    nl = jnp.tanh(x @ params["w1"] + params["b1"])
    pc = nl * params["pw"]
    thr = jnp.where((pc > 0.2) | (pc < -0.2), pc, 0.0)
    sel = x * thr
    h = jnp.maximum(sel @ params["wd1"] + params["bd1"], 0.0)
    return h @ params["wd2"] + params["bd2"]


def make_params(key, D, H, C):
    ks = jax.random.split(key, 7)
    # uniform inits (pairwise_weights uses nn.init.uniform_ -> U[0,1) in torch)
    return {
        "w1":  jax.random.uniform(ks[0], (D, D), jnp.float32, -0.1, 0.1),
        "b1":  jax.random.uniform(ks[1], (1, D), jnp.float32, -0.1, 0.1),
        "pw":  jax.random.uniform(ks[2], (1, D), jnp.float32, 0.0, 1.0),
        "wd1": jax.random.uniform(ks[3], (D, H), jnp.float32, -0.1, 0.1),
        "bd1": jax.random.uniform(ks[4], (1, H), jnp.float32, -0.1, 0.1),
        "wd2": jax.random.uniform(ks[5], (H, C), jnp.float32, -0.1, 0.1),
        "bd2": jax.random.uniform(ks[6], (1, C), jnp.float32, -0.1, 0.1),
    }


if __name__ == "__main__":
    # batch deliberately NOT a multiple of 8 to exercise the padding path
    B, D, H, C = 70, 128, 32, 8   # batch, input_dim, decision-net hidden, classes

    key = jax.random.PRNGKey(0)
    kx, kp = jax.random.split(key)
    x = jax.random.normal(kx, (B, D), jnp.float32)
    params = make_params(kp, D, H, C)

    # Default path: f32 matmul operands (exactly matches the module's numerics).
    # On v6e/v7x, pass matmul_dtype=jnp.bfloat16 for higher MXU throughput
    # (loosen the tolerance to ~1e-2 in that case).
    fwd = functools.partial(neuralfs_forward, tile_b=256,
                            matmul_dtype=jnp.float32)
    out = jax.block_until_ready(fwd(x, params))

    ref = _reference_forward(x, params)
    assert out.shape == (B, C)
    assert jnp.allclose(out, ref, atol=1e-5, rtol=1e-5), "mismatch vs reference"

    print("KERNEL_OK")
</pallas_src>

<mosaic_0001>
module attributes {stable_mosaic.version = 11 : i64} {
  func.func @_neuralfs_kernel(%arg0: i32, %arg1: memref<72x128xf32, #tpu.memory_space<vmem>>, %arg2: memref<128x128xf32, #tpu.memory_space<vmem>>, %arg3: memref<1x128xf32, #tpu.memory_space<vmem>>, %arg4: memref<1x128xf32, #tpu.memory_space<vmem>>, %arg5: memref<128x128xf32, #tpu.memory_space<vmem>>, %arg6: memref<1x128xf32, #tpu.memory_space<vmem>>, %arg7: memref<128x128xf32, #tpu.memory_space<vmem>>, %arg8: memref<1x128xf32, #tpu.memory_space<vmem>>, %arg9: memref<72x128xf32, #tpu.memory_space<vmem>>) attributes {dimension_semantics = [#tpu.dimension_semantics<parallel>], iteration_bounds = array<i64: 1>, scalar_prefetch = 0 : i64, scratch_operands = 0 : i64, tpu.core_type = #tpu.core_type<tc>, window_params = [{transform_indices = @transform_0, window_bounds = array<i64: 72, 128>}, {pipeline_mode = #tpu.pipeline_mode<synchronous>, transform_indices = @transform_1, window_bounds = array<i64: 128, 128>}, {pipeline_mode = #tpu.pipeline_mode<synchronous>, transform_indices = @transform_2, window_bounds = array<i64: 1, 128>}, {pipeline_mode = #tpu.pipeline_mode<synchronous>, transform_indices = @transform_3, window_bounds = array<i64: 1, 128>}, {pipeline_mode = #tpu.pipeline_mode<synchronous>, transform_indices = @transform_4, window_bounds = array<i64: 128, 128>}, {pipeline_mode = #tpu.pipeline_mode<synchronous>, transform_indices = @transform_5, window_bounds = array<i64: 1, 128>}, {pipeline_mode = #tpu.pipeline_mode<synchronous>, transform_indices = @transform_6, window_bounds = array<i64: 128, 128>}, {pipeline_mode = #tpu.pipeline_mode<synchronous>, transform_indices = @transform_7, window_bounds = array<i64: 1, 128>}, {transform_indices = @transform_8, window_bounds = array<i64: 72, 128>}]} {
    %c0 = arith.constant 0 : index
    %c0_0 = arith.constant 0 : index
    %0 = vector.load %arg1[%c0, %c0_0] : memref<72x128xf32, #tpu.memory_space<vmem>>, vector<72x128xf32>
    %c0_1 = arith.constant 0 : index
    %c0_2 = arith.constant 0 : index
    %1 = vector.load %arg2[%c0_1, %c0_2] : memref<128x128xf32, #tpu.memory_space<vmem>>, vector<128x128xf32>
    %cst = arith.constant dense<0.000000e+00> : vector<72x128xf32>
    %2 = tpu.matmul %0, %1, %cst {dimension_numbers = #tpu.dot_dimension_numbers<[1], [0], [0], [1], [0, 0, 1, 1], [], []>} : vector<72x128xf32>, vector<128x128xf32>, vector<72x128xf32> -> vector<72x128xf32>
    %c0_3 = arith.constant 0 : index
    %c0_4 = arith.constant 0 : index
    %3 = vector.load %arg3[%c0_3, %c0_4] : memref<1x128xf32, #tpu.memory_space<vmem>>, vector<1x128xf32>
    %4 = vector.broadcast %3 : vector<1x128xf32> to vector<72x128xf32>
    %5 = arith.addf %2, %4 : vector<72x128xf32>
    %6 = math.tanh %5 : vector<72x128xf32>
    %c0_5 = arith.constant 0 : index
    %c0_6 = arith.constant 0 : index
    %7 = vector.load %arg4[%c0_5, %c0_6] : memref<1x128xf32, #tpu.memory_space<vmem>>, vector<1x128xf32>
    %8 = vector.broadcast %7 : vector<1x128xf32> to vector<72x128xf32>
    %9 = arith.mulf %6, %8 : vector<72x128xf32>
    %10 = math.absf %9 : vector<72x128xf32>
    %cst_7 = arith.constant 2.000000e-01 : f32
    %11 = vector.broadcast %cst_7 : f32 to vector<72x128xf32>
    %12 = arith.cmpf ogt, %10, %11 : vector<72x128xf32>
    %cst_8 = arith.constant 0.000000e+00 : f32
    %13 = vector.broadcast %cst_8 : f32 to vector<72x128xf32>
    %14 = arith.select %12, %9, %13 : vector<72x128xi1>, vector<72x128xf32>
    %15 = arith.mulf %0, %14 : vector<72x128xf32>
    %c0_9 = arith.constant 0 : index
    %c0_10 = arith.constant 0 : index
    %16 = vector.load %arg5[%c0_9, %c0_10] : memref<128x128xf32, #tpu.memory_space<vmem>>, vector<128x128xf32>
    %cst_11 = arith.constant dense<0.000000e+00> : vector<72x128xf32>
    %17 = tpu.matmul %15, %16, %cst_11 {dimension_numbers = #tpu.dot_dimension_numbers<[1], [0], [0], [1], [0, 0, 1, 1], [], []>} : vector<72x128xf32>, vector<128x128xf32>, vector<72x128xf32> -> vector<72x128xf32>
    %c0_12 = arith.constant 0 : index
    %c0_13 = arith.constant 0 : index
    %18 = vector.load %arg6[%c0_12, %c0_13] : memref<1x128xf32, #tpu.memory_space<vmem>>, vector<1x128xf32>
    %19 = vector.broadcast %18 : vector<1x128xf32> to vector<72x128xf32>
    %20 = arith.addf %17, %19 : vector<72x128xf32>
    %cst_14 = arith.constant 0.000000e+00 : f32
    %21 = vector.broadcast %cst_14 : f32 to vector<72x128xf32>
    %22 = arith.maximumf %20, %21 : vector<72x128xf32>
    %c0_15 = arith.constant 0 : index
    %c0_16 = arith.constant 0 : index
    %23 = vector.load %arg7[%c0_15, %c0_16] : memref<128x128xf32, #tpu.memory_space<vmem>>, vector<128x128xf32>
    %cst_17 = arith.constant dense<0.000000e+00> : vector<72x128xf32>
    %24 = tpu.matmul %22, %23, %cst_17 {dimension_numbers = #tpu.dot_dimension_numbers<[1], [0], [0], [1], [0, 0, 1, 1], [], []>} : vector<72x128xf32>, vector<128x128xf32>, vector<72x128xf32> -> vector<72x128xf32>
    %c0_18 = arith.constant 0 : index
    %c0_19 = arith.constant 0 : index
    %25 = vector.load %arg8[%c0_18, %c0_19] : memref<1x128xf32, #tpu.memory_space<vmem>>, vector<1x128xf32>
    %26 = vector.broadcast %25 : vector<1x128xf32> to vector<72x128xf32>
    %27 = arith.addf %24, %26 : vector<72x128xf32>
    %c0_20 = arith.constant 0 : index
    %c0_21 = arith.constant 0 : index
    %28 = vector.load %arg9[%c0_20, %c0_21] : memref<72x128xf32, #tpu.memory_space<vmem>>, vector<72x128xf32>
    tpu.vector_store %arg9[%c0_20, %c0_21], %27 {strides = array<i32>} : memref<72x128xf32, #tpu.memory_space<vmem>>, vector<72x128xf32>,
    return
  }
  func.func @transform_0(%arg0: i32) -> (i32, i32) {
    %c0_i32 = arith.constant 0 : i32
    %c0_i32_0 = arith.constant 0 : i32
    return %arg0, %c0_i32 : i32, i32
  }
  func.func @transform_1(%arg0: i32) -> (i32, i32) {
    %c0_i32 = arith.constant 0 : i32
    %c0_i32_0 = arith.constant 0 : i32
    %c0_i32_1 = arith.constant 0 : i32
    return %c0_i32, %c0_i32_0 : i32, i32
  }
  func.func @transform_2(%arg0: i32) -> (i32, i32) {
    %c0_i32 = arith.constant 0 : i32
    %c0_i32_0 = arith.constant 0 : i32
    %c0_i32_1 = arith.constant 0 : i32
    return %c0_i32, %c0_i32_0 : i32, i32
  }
  func.func @transform_3(%arg0: i32) -> (i32, i32) {
    %c0_i32 = arith.constant 0 : i32
    %c0_i32_0 = arith.constant 0 : i32
    %c0_i32_1 = arith.constant 0 : i32
    return %c0_i32, %c0_i32_0 : i32, i32
  }
  func.func @transform_4(%arg0: i32) -> (i32, i32) {
    %c0_i32 = arith.constant 0 : i32
    %c0_i32_0 = arith.constant 0 : i32
    %c0_i32_1 = arith.constant 0 : i32
    return %c0_i32, %c0_i32_0 : i32, i32
  }
  func.func @transform_5(%arg0: i32) -> (i32, i32) {
    %c0_i32 = arith.constant 0 : i32
    %c0_i32_0 = arith.constant 0 : i32
    %c0_i32_1 = arith.constant 0 : i32
    return %c0_i32, %c0_i32_0 : i32, i32
  }
  func.func @transform_6(%arg0: i32) -> (i32, i32) {
    %c0_i32 = arith.constant 0 : i32
    %c0_i32_0 = arith.constant 0 : i32
    %c0_i32_1 = arith.constant 0 : i32
    return %c0_i32, %c0_i32_0 : i32, i32
  }
  func.func @transform_7(%arg0: i32) -> (i32, i32) {
    %c0_i32 = arith.constant 0 : i32
    %c0_i32_0 = arith.constant 0 : i32
    %c0_i32_1 = arith.constant 0 : i32
    return %c0_i32, %c0_i32_0 : i32, i32
  }
  func.func @transform_8(%arg0: i32) -> (i32, i32) {
    %c0_i32 = arith.constant 0 : i32
    %c0_i32_0 = arith.constant 0 : i32
    return %arg0, %c0_i32 : i32, i32
  }
}

</mosaic_0001>

<llo_original>
// kernel: tpu_custom_call.1
$region0: #{tpu_custom_call.1}
  #allocation0 [shape = 'u32[]', space=smem, size = 0x4, offset = 0x4, fixed_abs, tag = 'smem constant byte address 0x4 - core index']
  #allocation1 [shape = 'u32[144,128]{1,0:T(1,128)}', space=vmem, size = 0x12000, scoped, tag = 'internal scratch']
  %s0 = inlined_call_operand.hbm [shape: f32[72,128], index: 0, kind: input, shape index: {}]
  %s1 = inlined_call_operand.hbm [shape: f32[128,128], index: 1, kind: input, shape index: {}]
  %s2 = inlined_call_operand.hbm [shape: f32[1,128], index: 2, kind: input, shape index: {}]
  %s3 = inlined_call_operand.hbm [shape: f32[1,128], index: 3, kind: input, shape index: {}]
  %s4 = inlined_call_operand.hbm [shape: f32[128,128], index: 4, kind: input, shape index: {}]
  %s5 = inlined_call_operand.hbm [shape: f32[1,128], index: 5, kind: input, shape index: {}]
  %s6 = inlined_call_operand.hbm [shape: f32[128,128], index: 6, kind: input, shape index: {}]
  %s7 = inlined_call_operand.hbm [shape: f32[1,128], index: 7, kind: input, shape index: {}]
  %s8 = inlined_call_operand.hbm [shape: f32[72,128], index: 8, kind: output, shape index: {}]
  %s9 = sld [smem:[#allocation0]]
  $region74: #{tpu_custom_call.1} parent=0
    _
  %s11 = ssub.s32 1, %s9
  %s12 = scalar_select 0, %s11, %s9
  $region1: #{tpu_custom_call.1} parent=0
    #allocation2 [shape = 'u8[36864]{0}', space=vmem, size = 0x9000, scoped, tag = 'input window, operand 0, single buffered']
    #allocation3 [shape = 's32[1]{0}', space=sflag, size = 0x4, scoped, tag = 'scoped memory for tpu_custom_call.1']
    #allocation4 [shape = 's32[1]{0}', space=sflag, size = 0x4, scoped, tag = 'scoped memory for tpu_custom_call.1']
    #allocation5 [shape = 'u8[65536]{0}', space=vmem, size = 0x10000, scoped, tag = 'input window, operand 1, single buffered']
    #allocation6 [shape = 's32[1]{0}', space=sflag, size = 0x4, scoped, tag = 'scoped memory for tpu_custom_call.1']
    #allocation7 [shape = 'u8[512]{0}', space=vmem, size = 0x400, scoped, tag = 'input window, operand 2, single buffered']
    #allocation8 [shape = 'u8[512]{0}', space=vmem, size = 0x400, scoped, tag = 'input window, operand 3, single buffered']
    #allocation9 [shape = 's32[1]{0}', space=sflag, size = 0x4, scoped, tag = 'scoped memory for tpu_custom_call.1']
    #allocation10 [shape = 'u8[65536]{0}', space=vmem, size = 0x10000, scoped, tag = 'input window, operand 4, single buffered']
    #allocation11 [shape = 'u8[512]{0}', space=vmem, size = 0x400, scoped, tag = 'input window, operand 5, single buffered']
    #allocation12 [shape = 's32[1]{0}', space=sflag, size = 0x4, scoped, tag = 'scoped memory for tpu_custom_call.1']
    #allocation13 [shape = 'u8[65536]{0}', space=vmem, size = 0x10000, scoped, tag = 'input window, operand 6, single buffered']
    #allocation14 [shape = 'u8[512]{0}', space=vmem, size = 0x400, scoped, tag = 'input window, operand 7, single buffered']
    #allocation15 [shape = 's32[1]{0}', space=sflag, size = 0x4, scoped, tag = 'scoped memory for tpu_custom_call.1']
    #allocation16 [shape = 'u8[36864]{0}', space=vmem, size = 0x9000, scoped, tag = 'output window, operand 0, single buffered']
    %13 = vsyncpa [#allocation3], 0
    %14 = vsyncpa [#allocation6], 0
    %15 = vsyncpa [#allocation9], 0
    %16 = vsyncpa [#allocation12], 0
    %17 = vsyncpa [#allocation15], 0
    %18 = vsyncpa [#allocation4], 0
    // Predicated region
    $region2: #{tpu_custom_call.1} parent=1 // pred_check
      _
    $region3: #{tpu_custom_call.1} parent=1 // pred_check_branch
      %20 = sbr.rel (0) target = $region5
    $region4: #{tpu_custom_call.1} parent=1 // pred_region
      %s22 = ssub.s32 1152, 1152
      %23 = vsyncadd [#allocation3], %s22
      %s24 = sshll.u32 [#allocation2], 4
      %s25 = int_to_ptr.vmem [resolvable:$true] %s24
      %30 = dma.hbm_to_vmem [thread:$0]  %s0, 1152, %s25, [#allocation3], 128, 128, 8
    $region5: #{tpu_custom_call.1} parent=1 // pred_fallthru
      _
    // Predicated region
    $region6: #{tpu_custom_call.1} parent=1 // pred_check
      _
    $region7: #{tpu_custom_call.1} parent=1 // pred_check_branch
      %32 = sbr.rel (0) target = $region9
    $region8: #{tpu_custom_call.1} parent=1 // pred_region
      %s34 = ssub.s32 2048, 2048
      %35 = vsyncadd [#allocation6], %s34
      %s36 = sshll.u32 [#allocation5], 4
      %s37 = int_to_ptr.vmem [resolvable:$true] %s36
      %42 = dma.hbm_to_vmem [thread:$0]  %s1, 2048, %s37, [#allocation6], 128, 128, 8
    $region9: #{tpu_custom_call.1} parent=1 // pred_fallthru
      _
    // Predicated region
    $region10: #{tpu_custom_call.1} parent=1 // pred_check
      _
    $region11: #{tpu_custom_call.1} parent=1 // pred_check_branch
      %44 = sbr.rel (0) target = $region13
    $region12: #{tpu_custom_call.1} parent=1 // pred_region
      %s46 = ssub.s32 16, 16
      %47 = vsyncadd [#allocation6], %s46
      %s49 = sshll.u32 [#allocation7], 4
      %s50 = int_to_ptr.vmem [resolvable:$true] %s49
      %52 = dma.hbm_to_vmem [thread:$0]  %s2, 16, %s50, [#allocation6]
    $region13: #{tpu_custom_call.1} parent=1 // pred_fallthru
      _
    // Predicated region
    $region14: #{tpu_custom_call.1} parent=1 // pred_check
      _
    $region15: #{tpu_custom_call.1} parent=1 // pred_check_branch
      %54 = sbr.rel (0) target = $region17
    $region16: #{tpu_custom_call.1} parent=1 // pred_region
      %s56 = ssub.s32 16, 16
      %57 = vsyncadd [#allocation9], %s56
      %s59 = sshll.u32 [#allocation8], 4
      %s60 = int_to_ptr.vmem [resolvable:$true] %s59
      %62 = dma.hbm_to_vmem [thread:$0]  %s3, 16, %s60, [#allocation9]
    $region17: #{tpu_custom_call.1} parent=1 // pred_fallthru
      _
    // Predicated region
    $region18: #{tpu_custom_call.1} parent=1 // pred_check
      _
    $region19: #{tpu_custom_call.1} parent=1 // pred_check_branch
      %64 = sbr.rel (0) target = $region21
    $region20: #{tpu_custom_call.1} parent=1 // pred_region
      %s66 = ssub.s32 2048, 2048
      %67 = vsyncadd [#allocation9], %s66
      %s68 = sshll.u32 [#allocation10], 4
      %s69 = int_to_ptr.vmem [resolvable:$true] %s68
      %74 = dma.hbm_to_vmem [thread:$0]  %s4, 2048, %s69, [#allocation9], 128, 128, 8
    $region21: #{tpu_custom_call.1} parent=1 // pred_fallthru
      _
    // Predicated region
    $region22: #{tpu_custom_call.1} parent=1 // pred_check
      _
    $region23: #{tpu_custom_call.1} parent=1 // pred_check_branch
      %76 = sbr.rel (0) target = $region25
    $region24: #{tpu_custom_call.1} parent=1 // pred_region
      %s78 = ssub.s32 16, 16
      %79 = vsyncadd [#allocation12], %s78
      %s81 = sshll.u32 [#allocation11], 4
      %s82 = int_to_ptr.vmem [resolvable:$true] %s81
      %84 = dma.hbm_to_vmem [thread:$0]  %s5, 16, %s82, [#allocation12]
    $region25: #{tpu_custom_call.1} parent=1 // pred_fallthru
      _
    // Predicated region
    $region26: #{tpu_custom_call.1} parent=1 // pred_check
      _
    $region27: #{tpu_custom_call.1} parent=1 // pred_check_branch
      %86 = sbr.rel (0) target = $region29
    $region28: #{tpu_custom_call.1} parent=1 // pred_region
      %s88 = ssub.s32 2048, 2048
      %89 = vsyncadd [#allocation12], %s88
      %s90 = sshll.u32 [#allocation13], 4
      %s91 = int_to_ptr.vmem [resolvable:$true] %s90
      %96 = dma.hbm_to_vmem [thread:$0]  %s6, 2048, %s91, [#allocation12], 128, 128, 8
    $region29: #{tpu_custom_call.1} parent=1 // pred_fallthru
      _
    // Predicated region
    $region30: #{tpu_custom_call.1} parent=1 // pred_check
      _
    $region31: #{tpu_custom_call.1} parent=1 // pred_check_branch
      %98 = sbr.rel (0) target = $region33
    $region32: #{tpu_custom_call.1} parent=1 // pred_region
      %s100 = ssub.s32 16, 16
      %101 = vsyncadd [#allocation15], %s100
      %s103 = sshll.u32 [#allocation14], 4
      %s104 = int_to_ptr.vmem [resolvable:$true] %s103
      %106 = dma.hbm_to_vmem [thread:$0]  %s7, 16, %s104, [#allocation15]
    $region33: #{tpu_custom_call.1} parent=1 // pred_fallthru
      _
    // Predicated region
    $region34: #{tpu_custom_call.1} parent=1 // pred_check
      _
    $region35: #{tpu_custom_call.1} parent=1 // pred_check_branch
      %108 = sbr.rel (0) target = $region37
    $region36: #{tpu_custom_call.1} parent=1 // pred_region
      %109 = dma.done [#allocation3], 1152
    $region37: #{tpu_custom_call.1} parent=1 // pred_fallthru
      _
    // Predicated region
    $region38: #{tpu_custom_call.1} parent=1 // pred_check
      _
    $region39: #{tpu_custom_call.1} parent=1 // pred_check_branch
      %111 = sbr.rel (0) target = $region41
    $region40: #{tpu_custom_call.1} parent=1 // pred_region
      %112 = dma.done [#allocation6], 2048
    $region41: #{tpu_custom_call.1} parent=1 // pred_fallthru
      _
    // Predicated region
    $region42: #{tpu_custom_call.1} parent=1 // pred_check
      _
    $region43: #{tpu_custom_call.1} parent=1 // pred_check_branch
      %114 = sbr.rel (0) target = $region45
    $region44: #{tpu_custom_call.1} parent=1 // pred_region
      %115 = dma.done [#allocation6], 16
    $region45: #{tpu_custom_call.1} parent=1 // pred_fallthru
      _
    // Predicated region
    $region46: #{tpu_custom_call.1} parent=1 // pred_check
      _
    $region47: #{tpu_custom_call.1} parent=1 // pred_check_branch
      %117 = sbr.rel (0) target = $region49
    $region48: #{tpu_custom_call.1} parent=1 // pred_region
      %118 = dma.done [#allocation9], 16
    $region49: #{tpu_custom_call.1} parent=1 // pred_fallthru
      _
    // Predicated region
    $region50: #{tpu_custom_call.1} parent=1 // pred_check
      _
    $region51: #{tpu_custom_call.1} parent=1 // pred_check_branch
      %120 = sbr.rel (0) target = $region53
    $region52: #{tpu_custom_call.1} parent=1 // pred_region
      %121 = dma.done [#allocation9], 2048
    $region53: #{tpu_custom_call.1} parent=1 // pred_fallthru
      _
    // Predicated region
    $region54: #{tpu_custom_call.1} parent=1 // pred_check
      _
    $region55: #{tpu_custom_call.1} parent=1 // pred_check_branch
      %123 = sbr.rel (0) target = $region57
    $region56: #{tpu_custom_call.1} parent=1 // pred_region
      %124 = dma.done [#allocation12], 16
    $region57: #{tpu_custom_call.1} parent=1 // pred_fallthru
      _
    // Predicated region
    $region58: #{tpu_custom_call.1} parent=1 // pred_check
      _
    $region59: #{tpu_custom_call.1} parent=1 // pred_check_branch
      %126 = sbr.rel (0) target = $region61
    $region60: #{tpu_custom_call.1} parent=1 // pred_region
      %127 = dma.done [#allocation12], 2048
    $region61: #{tpu_custom_call.1} parent=1 // pred_fallthru
      _
    // Predicated region
    $region62: #{tpu_custom_call.1} parent=1 // pred_check
      _
    $region63: #{tpu_custom_call.1} parent=1 // pred_check_branch
      %129 = sbr.rel (0) target = $region65
    $region64: #{tpu_custom_call.1} parent=1 // pred_region
      %130 = dma.done [#allocation15], 16
    $region65: #{tpu_custom_call.1} parent=1 // pred_fallthru
      _
    %v131 = vld [vmem:[#allocation2] sm:$0xff]
    %v132 = vld [vmem:[#allocation2 + $0x8] sm:$0xff]
    %v133 = vld [vmem:[#allocation2 + $0x10] sm:$0xff]
    %v134 = vld [vmem:[#allocation2 + $0x18] sm:$0xff]
    %v135 = vld [vmem:[#allocation2 + $0x20] sm:$0xff]
    %v136 = vld [vmem:[#allocation2 + $0x28] sm:$0xff]
    %v137 = vld [vmem:[#allocation2 + $0x30] sm:$0xff]
    %v138 = vld [vmem:[#allocation2 + $0x38] sm:$0xff]
    %v139 = vld [vmem:[#allocation2 + $0x40] sm:$0xff]
    %v140 = vld [vmem:[#allocation5] sm:$0xff]
    %v141 = vld [vmem:[#allocation5 + $0x8] sm:$0xff]
    %v142 = vld [vmem:[#allocation5 + $0x10] sm:$0xff]
    %v143 = vld [vmem:[#allocation5 + $0x18] sm:$0xff]
    %v144 = vld [vmem:[#allocation5 + $0x20] sm:$0xff]
    %v145 = vld [vmem:[#allocation5 + $0x28] sm:$0xff]
    %v146 = vld [vmem:[#allocation5 + $0x30] sm:$0xff]
    %v147 = vld [vmem:[#allocation5 + $0x38] sm:$0xff]
    %v148 = vld [vmem:[#allocation5 + $0x40] sm:$0xff]
    %v149 = vld [vmem:[#allocation5 + $0x48] sm:$0xff]
    %v150 = vld [vmem:[#allocation5 + $0x50] sm:$0xff]
    %v151 = vld [vmem:[#allocation5 + $0x58] sm:$0xff]
    %v152 = vld [vmem:[#allocation5 + $0x60] sm:$0xff]
    %v153 = vld [vmem:[#allocation5 + $0x68] sm:$0xff]
    %v154 = vld [vmem:[#allocation5 + $0x70] sm:$0xff]
    %v155 = vld [vmem:[#allocation5 + $0x78] sm:$0xff]
    %v156 = vld [vmem:[#allocation7] sm:$0x1]
    %v158 = vlaneseq
    %v159 = vshrl.u32 %v158, 7
    %v160 = vsub.s32 0, %v159
    %v161 = vrot.slane %v156, %v160
    %163 = vmatprep.subr.mxu0 0.0
    %164 = vmatpush1.msra.mxu0 %v140
    %165 = vmatprep.subr.mxu0 0.0
    %166 = vmatpush1.msra.mxu0 %v141
    %167 = vmatprep.subr.mxu0 0.0
    %168 = vmatpush1.msra.mxu0 %v142
    %169 = vmatprep.subr.mxu0 0.0
    %170 = vmatpush1.msra.mxu0 %v143
    %171 = vmatprep.subr.mxu0 0.0
    %172 = vmatpush1.msra.mxu0 %v144
    %173 = vmatprep.subr.mxu0 0.0
    %174 = vmatpush1.msra.mxu0 %v145
    %175 = vmatprep.subr.mxu0 0.0
    %176 = vmatpush1.msra.mxu0 %v146
    %177 = vmatprep.subr.mxu0 0.0
    %178 = vmatpush1.msra.mxu0 %v147
    %179 = vmatprep.subr.mxu0 0.0
    %180 = vmatpush1.msra.mxu0 %v148
    %181 = vmatprep.subr.mxu0 0.0
    %182 = vmatpush1.msra.mxu0 %v149
    %183 = vmatprep.subr.mxu0 0.0
    %184 = vmatpush1.msra.mxu0 %v150
    %185 = vmatprep.subr.mxu0 0.0
    %186 = vmatpush1.msra.mxu0 %v151
    %187 = vmatprep.subr.mxu0 0.0
    %188 = vmatpush1.msra.mxu0 %v152
    %189 = vmatprep.subr.mxu0 0.0
    %190 = vmatpush1.msra.mxu0 %v153
    %191 = vmatprep.subr.mxu0 0.0
    %192 = vmatpush1.msra.mxu0 %v154
    %193 = vmatprep.subr.mxu0 0.0
    %194 = vmatpush1.msra.mxu0 %v155
    %195 = vmatprep.subr.mxu0 0.0
    %196 = vmatpush1.msra.mxu0 0.0
    %197 = vmatprep.subr.mxu0 0.0
    %198 = vmatpush1.msra.mxu0 0.0
    %199 = vmatprep.subr.mxu0 0.0
    %200 = vmatpush1.msra.mxu0 0.0
    %201 = vmatprep.subr.mxu0 0.0
    %202 = vmatpush1.msra.mxu0 0.0
    %203 = vmatprep.subr.mxu0 0.0
    %204 = vmatpush1.msra.mxu0 0.0
    %205 = vmatprep.subr.mxu0 0.0
    %206 = vmatpush1.msra.mxu0 0.0
    %207 = vmatprep.subr.mxu0 0.0
    %208 = vmatpush1.msra.mxu0 0.0
    %209 = vmatprep.subr.mxu0 0.0
    %210 = vmatpush1.msra.mxu0 0.0
    %211 = vmatprep.subr.mxu0 0.0
    %212 = vmatpush1.msra.mxu0 0.0
    %213 = vmatprep.subr.mxu0 0.0
    %214 = vmatpush1.msra.mxu0 0.0
    %215 = vmatprep.subr.mxu0 0.0
    %216 = vmatpush1.msra.mxu0 0.0
    %217 = vmatprep.subr.mxu0 0.0
    %218 = vmatpush1.msra.mxu0 0.0
    %219 = vmatprep.subr.mxu0 0.0
    %220 = vmatpush1.msra.mxu0 0.0
    %221 = vmatprep.subr.mxu0 0.0
    %222 = vmatpush1.msra.mxu0 0.0
    %223 = vmatprep.subr.mxu0 0.0
    %224 = vmatpush1.msra.mxu0 0.0
    %225 = vmatprep.subr.mxu0 0.0
    %226 = vmatpush1.msra.mxu0 0.0
    %227 = vmatprep.mubr.f32.mxu0 0.0
    %228 = vmatmul.mubr.f32.gmra.mrb[0].mxu0 %v131
    %v229 = vpop.f32.mrb[0].mxu0
    %v230 = vadd.f32 %v161, %v229
    %v231 = vpop.f32.mrb[0].mxu0
    %232 = vmatprep.mubr.f32.mxu0 0.0
    %233 = vmatmul.mubr.f32.gmra.mrb[0].mxu0 %v132
    %v234 = vpop.f32.mrb[0].mxu0
    %v235 = vadd.f32 %v161, %v234
    %v236 = vpop.f32.mrb[0].mxu0
    %237 = vmatprep.mubr.f32.mxu0 0.0
    %238 = vmatmul.mubr.f32.gmra.mrb[0].mxu0 %v133
    %v239 = vpop.f32.mrb[0].mxu0
    %v240 = vadd.f32 %v161, %v239
    %v241 = vpop.f32.mrb[0].mxu0
    %242 = vmatprep.mubr.f32.mxu0 0.0
    %243 = vmatmul.mubr.f32.gmra.mrb[0].mxu0 %v134
    %v244 = vpop.f32.mrb[0].mxu0
    %v245 = vadd.f32 %v161, %v244
    %v246 = vpop.f32.mrb[0].mxu0
    %247 = vmatprep.mubr.f32.mxu0 0.0
    %248 = vmatmul.mubr.f32.gmra.mrb[0].mxu0 %v135
    %v249 = vpop.f32.mrb[0].mxu0
    %v250 = vadd.f32 %v161, %v249
    %v251 = vpop.f32.mrb[0].mxu0
    %252 = vmatprep.mubr.f32.mxu0 0.0
    %253 = vmatmul.mubr.f32.gmra.mrb[0].mxu0 %v136
    %v254 = vpop.f32.mrb[0].mxu0
    %v255 = vadd.f32 %v161, %v254
    %v256 = vpop.f32.mrb[0].mxu0
    %257 = vmatprep.mubr.f32.mxu0 0.0
    %258 = vmatmul.mubr.f32.gmra.mrb[0].mxu0 %v137
    %v259 = vpop.f32.mrb[0].mxu0
    %v260 = vadd.f32 %v161, %v259
    %v261 = vpop.f32.mrb[0].mxu0
    %262 = vmatprep.mubr.f32.mxu0 0.0
    %263 = vmatmul.mubr.f32.gmra.mrb[0].mxu0 %v138
    %v264 = vpop.f32.mrb[0].mxu0
    %v265 = vadd.f32 %v161, %v264
    %v266 = vpop.f32.mrb[0].mxu0
    %267 = vmatprep.mubr.f32.mxu0 0.0
    %268 = vmatmul.mubr.f32.gmra.mrb[0].mxu0 %v139
    %v269 = vpop.f32.mrb[0].mxu0
    %v270 = vadd.f32 %v161, %v269
    %v271 = vpop.f32.mrb[0].mxu0
    %272 = vdwg.mxu0
    %v273 = vtanh.pop %v230
    %v274 = vtanh.pop %v235
    %v275 = vtanh.pop %v240
    %v276 = vtanh.pop %v245
    %v277 = vtanh.pop %v250
    %v278 = vtanh.pop %v255
    %v279 = vtanh.pop %v260
    %v280 = vtanh.pop %v265
    %v281 = vtanh.pop %v270
    %v282 = vld [vmem:[#allocation8] sm:$0x1]
    %v284 = vlaneseq
    %v285 = vshrl.u32 %v284, 7
    %v286 = vsub.s32 0, %v285
    %v287 = vrot.slane %v282, %v286
    %v289 = vmul.f32 %v273, %v287
    %v290 = vmul.f32 %v274, %v287
    %v291 = vmul.f32 %v275, %v287
    %v292 = vmul.f32 %v276, %v287
    %v293 = vmul.f32 %v277, %v287
    %v294 = vmul.f32 %v278, %v287
    %v295 = vmul.f32 %v279, %v287
    %v296 = vmul.f32 %v280, %v287
    %v297 = vmul.f32 %v281, %v287
    %v298 = vand.u32 2147483647, %v289
    %v299 = vand.u32 2147483647, %v290
    %v300 = vand.u32 2147483647, %v291
    %v301 = vand.u32 2147483647, %v292
    %v302 = vand.u32 2147483647, %v293
    %v303 = vand.u32 2147483647, %v294
    %v304 = vand.u32 2147483647, %v295
    %v305 = vand.u32 2147483647, %v296
    %v306 = vand.u32 2147483647, %v297
    %vm307 = vcmp.gt.f32.partialorder %v298, 0.2
    %vm308 = vcmp.gt.f32.partialorder %v299, 0.2
    %vm309 = vcmp.gt.f32.partialorder %v300, 0.2
    %vm310 = vcmp.gt.f32.partialorder %v301, 0.2
    %vm311 = vcmp.gt.f32.partialorder %v302, 0.2
    %vm312 = vcmp.gt.f32.partialorder %v303, 0.2
    %vm313 = vcmp.gt.f32.partialorder %v304, 0.2
    %vm314 = vcmp.gt.f32.partialorder %v305, 0.2
    %vm315 = vcmp.gt.f32.partialorder %v306, 0.2
    %v316 = vsel %vm307, %v289, 0.0
    %v317 = vsel %vm308, %v290, 0.0
    %v318 = vsel %vm309, %v291, 0.0
    %v319 = vsel %vm310, %v292, 0.0
    %v320 = vsel %vm311, %v293, 0.0
    %v321 = vsel %vm312, %v294, 0.0
    %v322 = vsel %vm313, %v295, 0.0
    %v323 = vsel %vm314, %v296, 0.0
    %v324 = vsel %vm315, %v297, 0.0
    %v325 = vmul.f32 %v131, %v316
    %v326 = vmul.f32 %v132, %v317
    %v327 = vmul.f32 %v133, %v318
    %v328 = vmul.f32 %v134, %v319
    %v329 = vmul.f32 %v135, %v320
    %v330 = vmul.f32 %v136, %v321
    %v331 = vmul.f32 %v137, %v322
    %v332 = vmul.f32 %v138, %v323
    %v333 = vmul.f32 %v139, %v324
    %v334 = vld [vmem:[#allocation10] sm:$0xff]
    %v335 = vld [vmem:[#allocation10 + $0x8] sm:$0xff]
    %v336 = vld [vmem:[#allocation10 + $0x10] sm:$0xff]
    %v337 = vld [vmem:[#allocation10 + $0x18] sm:$0xff]
    %v338 = vld [vmem:[#allocation10 + $0x20] sm:$0xff]
    %v339 = vld [vmem:[#allocation10 + $0x28] sm:$0xff]
    %v340 = vld [vmem:[#allocation10 + $0x30] sm:$0xff]
    %v341 = vld [vmem:[#allocation10 + $0x38] sm:$0xff]
    %v342 = vld [vmem:[#allocation10 + $0x40] sm:$0xff]
    %v343 = vld [vmem:[#allocation10 + $0x48] sm:$0xff]
    %v344 = vld [vmem:[#allocation10 + $0x50] sm:$0xff]
    %v345 = vld [vmem:[#allocation10 + $0x58] sm:$0xff]
    %v346 = vld [vmem:[#allocation10 + $0x60] sm:$0xff]
    %v347 = vld [vmem:[#allocation10 + $0x68] sm:$0xff]
    %v348 = vld [vmem:[#allocation10 + $0x70] sm:$0xff]
    %v349 = vld [vmem:[#allocation10 + $0x78] sm:$0xff]
    %v350 = vld [vmem:[#allocation11] sm:$0x1]
    %v352 = vlaneseq
    %v353 = vshrl.u32 %v352, 7
    %v354 = vsub.s32 0, %v353
    %v355 = vrot.slane %v350, %v354
    %357 = vmatprep.subr.mxu0 0.0
    %358 = vmatpush1.msra.mxu0 %v334
    %359 = vmatprep.subr.mxu0 0.0
    %360 = vmatpush1.msra.mxu0 %v335
    %361 = vmatprep.subr.mxu0 0.0
    %362 = vmatpush1.msra.mxu0 %v336
    %363 = vmatprep.subr.mxu0 0.0
    %364 = vmatpush1.msra.mxu0 %v337
    %365 = vmatprep.subr.mxu0 0.0
    %366 = vmatpush1.msra.mxu0 %v338
    %367 = vmatprep.subr.mxu0 0.0
    %368 = vmatpush1.msra.mxu0 %v339
    %369 = vmatprep.subr.mxu0 0.0
    %370 = vmatpush1.msra.mxu0 %v340
    %371 = vmatprep.subr.mxu0 0.0
    %372 = vmatpush1.msra.mxu0 %v341
    %373 = vmatprep.subr.mxu0 0.0
    %374 = vmatpush1.msra.mxu0 %v342
    %375 = vmatprep.subr.mxu0 0.0
    %376 = vmatpush1.msra.mxu0 %v343
    %377 = vmatprep.subr.mxu0 0.0
    %378 = vmatpush1.msra.mxu0 %v344
    %379 = vmatprep.subr.mxu0 0.0
    %380 = vmatpush1.msra.mxu0 %v345
    %381 = vmatprep.subr.mxu0 0.0
    %382 = vmatpush1.msra.mxu0 %v346
    %383 = vmatprep.subr.mxu0 0.0
    %384 = vmatpush1.msra.mxu0 %v347
    %385 = vmatprep.subr.mxu0 0.0
    %386 = vmatpush1.msra.mxu0 %v348
    %387 = vmatprep.subr.mxu0 0.0
    %388 = vmatpush1.msra.mxu0 %v349
    %389 = vmatprep.subr.mxu0 0.0
    %390 = vmatpush1.msra.mxu0 0.0
    %391 = vmatprep.subr.mxu0 0.0
    %392 = vmatpush1.msra.mxu0 0.0
    %393 = vmatprep.subr.mxu0 0.0
    %394 = vmatpush1.msra.mxu0 0.0
    %395 = vmatprep.subr.mxu0 0.0
    %396 = vmatpush1.msra.mxu0 0.0
    %397 = vmatprep.subr.mxu0 0.0
    %398 = vmatpush1.msra.mxu0 0.0
    %399 = vmatprep.subr.mxu0 0.0
    %400 = vmatpush1.msra.mxu0 0.0
    %401 = vmatprep.subr.mxu0 0.0
    %402 = vmatpush1.msra.mxu0 0.0
    %403 = vmatprep.subr.mxu0 0.0
    %404 = vmatpush1.msra.mxu0 0.0
    %405 = vmatprep.subr.mxu0 0.0
    %406 = vmatpush1.msra.mxu0 0.0
    %407 = vmatprep.subr.mxu0 0.0
    %408 = vmatpush1.msra.mxu0 0.0
    %409 = vmatprep.subr.mxu0 0.0
    %410 = vmatpush1.msra.mxu0 0.0
    %411 = vmatprep.subr.mxu0 0.0
    %412 = vmatpush1.msra.mxu0 0.0
    %413 = vmatprep.subr.mxu0 0.0
    %414 = vmatpush1.msra.mxu0 0.0
    %415 = vmatprep.subr.mxu0 0.0
    %416 = vmatpush1.msra.mxu0 0.0
    %417 = vmatprep.subr.mxu0 0.0
    %418 = vmatpush1.msra.mxu0 0.0
    %419 = vmatprep.subr.mxu0 0.0
    %420 = vmatpush1.msra.mxu0 0.0
    %421 = vmatprep.mubr.f32.mxu0 0.0
    %422 = vmatmul.mubr.f32.gmra.mrb[0].mxu0 %v325
    %v423 = vpop.f32.mrb[0].mxu0
    %v424 = vadd.f32 %v355, %v423
    %v425 = vpop.f32.mrb[0].mxu0
    %426 = vmatprep.mubr.f32.mxu0 0.0
    %427 = vmatmul.mubr.f32.gmra.mrb[0].mxu0 %v326
    %v428 = vpop.f32.mrb[0].mxu0
    %v429 = vadd.f32 %v355, %v428
    %v430 = vpop.f32.mrb[0].mxu0
    %431 = vmatprep.mubr.f32.mxu0 0.0
    %432 = vmatmul.mubr.f32.gmra.mrb[0].mxu0 %v327
    %v433 = vpop.f32.mrb[0].mxu0
    %v434 = vadd.f32 %v355, %v433
    %v435 = vpop.f32.mrb[0].mxu0
    %436 = vmatprep.mubr.f32.mxu0 0.0
    %437 = vmatmul.mubr.f32.gmra.mrb[0].mxu0 %v328
    %v438 = vpop.f32.mrb[0].mxu0
    %v439 = vadd.f32 %v355, %v438
    %v440 = vpop.f32.mrb[0].mxu0
    %441 = vmatprep.mubr.f32.mxu0 0.0
    %442 = vmatmul.mubr.f32.gmra.mrb[0].mxu0 %v329
    %v443 = vpop.f32.mrb[0].mxu0
    %v444 = vadd.f32 %v355, %v443
    %v445 = vpop.f32.mrb[0].mxu0
    %446 = vmatprep.mubr.f32.mxu0 0.0
    %447 = vmatmul.mubr.f32.gmra.mrb[0].mxu0 %v330
    %v448 = vpop.f32.mrb[0].mxu0
    %v449 = vadd.f32 %v355, %v448
    %v450 = vpop.f32.mrb[0].mxu0
    %451 = vmatprep.mubr.f32.mxu0 0.0
    %452 = vmatmul.mubr.f32.gmra.mrb[0].mxu0 %v331
    %v453 = vpop.f32.mrb[0].mxu0
    %v454 = vadd.f32 %v355, %v453
    %v455 = vpop.f32.mrb[0].mxu0
    %456 = vmatprep.mubr.f32.mxu0 0.0
    %457 = vmatmul.mubr.f32.gmra.mrb[0].mxu0 %v332
    %v458 = vpop.f32.mrb[0].mxu0
    %v459 = vadd.f32 %v355, %v458
    %v460 = vpop.f32.mrb[0].mxu0
    %461 = vmatprep.mubr.f32.mxu0 0.0
    %462 = vmatmul.mubr.f32.gmra.mrb[0].mxu0 %v333
    %v463 = vpop.f32.mrb[0].mxu0
    %v464 = vadd.f32 %v355, %v463
    %v465 = vpop.f32.mrb[0].mxu0
    %466 = vdwg.mxu0
    %v467 = vmax.f32 %v424, 0.0
    %v468 = vmax.f32 %v429, 0.0
    %v469 = vmax.f32 %v434, 0.0
    %v470 = vmax.f32 %v439, 0.0
    %v471 = vmax.f32 %v444, 0.0
    %v472 = vmax.f32 %v449, 0.0
    %v473 = vmax.f32 %v454, 0.0
    %v474 = vmax.f32 %v459, 0.0
    %v475 = vmax.f32 %v464, 0.0
    %v476 = vld [vmem:[#allocation13] sm:$0xff]
    %v477 = vld [vmem:[#allocation13 + $0x8] sm:$0xff]
    %v478 = vld [vmem:[#allocation13 + $0x10] sm:$0xff]
    %v479 = vld [vmem:[#allocation13 + $0x18] sm:$0xff]
    %v480 = vld [vmem:[#allocation13 + $0x20] sm:$0xff]
    %v481 = vld [vmem:[#allocation13 + $0x28] sm:$0xff]
    %v482 = vld [vmem:[#allocation13 + $0x30] sm:$0xff]
    %v483 = vld [vmem:[#allocation13 + $0x38] sm:$0xff]
    %v484 = vld [vmem:[#allocation13 + $0x40] sm:$0xff]
    %v485 = vld [vmem:[#allocation13 + $0x48] sm:$0xff]
    %v486 = vld [vmem:[#allocation13 + $0x50] sm:$0xff]
    %v487 = vld [vmem:[#allocation13 + $0x58] sm:$0xff]
    %v488 = vld [vmem:[#allocation13 + $0x60] sm:$0xff]
    %v489 = vld [vmem:[#allocation13 + $0x68] sm:$0xff]
    %v490 = vld [vmem:[#allocation13 + $0x70] sm:$0xff]
    %v491 = vld [vmem:[#allocation13 + $0x78] sm:$0xff]
    %v492 = vld [vmem:[#allocation14] sm:$0x1]
    %v494 = vlaneseq
    %v495 = vshrl.u32 %v494, 7
    %v496 = vsub.s32 0, %v495
    %v497 = vrot.slane %v492, %v496
    %499 = vmatprep.subr.mxu0 0.0
    %500 = vmatpush1.msra.mxu0 %v476
    %501 = vmatprep.subr.mxu0 0.0
    %502 = vmatpush1.msra.mxu0 %v477
    %503 = vmatprep.subr.mxu0 0.0
    %504 = vmatpush1.msra.mxu0 %v478
    %505 = vmatprep.subr.mxu0 0.0
    %506 = vmatpush1.msra.mxu0 %v479
    %507 = vmatprep.subr.mxu0 0.0
    %508 = vmatpush1.msra.mxu0 %v480
    %509 = vmatprep.subr.mxu0 0.0
    %510 = vmatpush1.msra.mxu0 %v481
    %511 = vmatprep.subr.mxu0 0.0
    %512 = vmatpush1.msra.mxu0 %v482
    %513 = vmatprep.subr.mxu0 0.0
    %514 = vmatpush1.msra.mxu0 %v483
    %515 = vmatprep.subr.mxu0 0.0
    %516 = vmatpush1.msra.mxu0 %v484
    %517 = vmatprep.subr.mxu0 0.0
    %518 = vmatpush1.msra.mxu0 %v485
    %519 = vmatprep.subr.mxu0 0.0
    %520 = vmatpush1.msra.mxu0 %v486
    %521 = vmatprep.subr.mxu0 0.0
    %522 = vmatpush1.msra.mxu0 %v487
    %523 = vmatprep.subr.mxu0 0.0
    %524 = vmatpush1.msra.mxu0 %v488
    %525 = vmatprep.subr.mxu0 0.0
    %526 = vmatpush1.msra.mxu0 %v489
    %527 = vmatprep.subr.mxu0 0.0
    %528 = vmatpush1.msra.mxu0 %v490
    %529 = vmatprep.subr.mxu0 0.0
    %530 = vmatpush1.msra.mxu0 %v491
    %531 = vmatprep.subr.mxu0 0.0
    %532 = vmatpush1.msra.mxu0 0.0
    %533 = vmatprep.subr.mxu0 0.0
    %534 = vmatpush1.msra.mxu0 0.0
    %535 = vmatprep.subr.mxu0 0.0
    %536 = vmatpush1.msra.mxu0 0.0
    %537 = vmatprep.subr.mxu0 0.0
    %538 = vmatpush1.msra.mxu0 0.0
    %539 = vmatprep.subr.mxu0 0.0
    %540 = vmatpush1.msra.mxu0 0.0
    %541 = vmatprep.subr.mxu0 0.0
    %542 = vmatpush1.msra.mxu0 0.0
    %543 = vmatprep.subr.mxu0 0.0
    %544 = vmatpush1.msra.mxu0 0.0
    %545 = vmatprep.subr.mxu0 0.0
    %546 = vmatpush1.msra.mxu0 0.0
    %547 = vmatprep.subr.mxu0 0.0
    %548 = vmatpush1.msra.mxu0 0.0
    %549 = vmatprep.subr.mxu0 0.0
    %550 = vmatpush1.msra.mxu0 0.0
    %551 = vmatprep.subr.mxu0 0.0
    %552 = vmatpush1.msra.mxu0 0.0
    %553 = vmatprep.subr.mxu0 0.0
    %554 = vmatpush1.msra.mxu0 0.0
    %555 = vmatprep.subr.mxu0 0.0
    %556 = vmatpush1.msra.mxu0 0.0
    %557 = vmatprep.subr.mxu0 0.0
    %558 = vmatpush1.msra.mxu0 0.0
    %559 = vmatprep.subr.mxu0 0.0
    %560 = vmatpush1.msra.mxu0 0.0
    %561 = vmatprep.subr.mxu0 0.0
    %562 = vmatpush1.msra.mxu0 0.0
    %563 = vmatprep.mubr.f32.mxu0 0.0
    %564 = vmatmul.mubr.f32.gmra.mrb[0].mxu0 %v467
    %v565 = vpop.f32.mrb[0].mxu0
    %v566 = vadd.f32 %v497, %v565
    %v567 = vpop.f32.mrb[0].mxu0
    %568 = vmatprep.mubr.f32.mxu0 0.0
    %569 = vmatmul.mubr.f32.gmra.mrb[0].mxu0 %v468
    %v570 = vpop.f32.mrb[0].mxu0
    %v571 = vadd.f32 %v497, %v570
    %v572 = vpop.f32.mrb[0].mxu0
    %573 = vmatprep.mubr.f32.mxu0 0.0
    %574 = vmatmul.mubr.f32.gmra.mrb[0].mxu0 %v469
    %v575 = vpop.f32.mrb[0].mxu0
    %v576 = vadd.f32 %v497, %v575
    %v577 = vpop.f32.mrb[0].mxu0
    %578 = vmatprep.mubr.f32.mxu0 0.0
    %579 = vmatmul.mubr.f32.gmra.mrb[0].mxu0 %v470
    %v580 = vpop.f32.mrb[0].mxu0
    %v581 = vadd.f32 %v497, %v580
    %v582 = vpop.f32.mrb[0].mxu0
    %583 = vmatprep.mubr.f32.mxu0 0.0
    %584 = vmatmul.mubr.f32.gmra.mrb[0].mxu0 %v471
    %v585 = vpop.f32.mrb[0].mxu0
    %v586 = vadd.f32 %v497, %v585
    %v587 = vpop.f32.mrb[0].mxu0
    %588 = vmatprep.mubr.f32.mxu0 0.0
    %589 = vmatmul.mubr.f32.gmra.mrb[0].mxu0 %v472
    %v590 = vpop.f32.mrb[0].mxu0
    %v591 = vadd.f32 %v497, %v590
    %v592 = vpop.f32.mrb[0].mxu0
    %593 = vmatprep.mubr.f32.mxu0 0.0
    %594 = vmatmul.mubr.f32.gmra.mrb[0].mxu0 %v473
    %v595 = vpop.f32.mrb[0].mxu0
    %v596 = vadd.f32 %v497, %v595
    %v597 = vpop.f32.mrb[0].mxu0
    %598 = vmatprep.mubr.f32.mxu0 0.0
    %599 = vmatmul.mubr.f32.gmra.mrb[0].mxu0 %v474
    %v600 = vpop.f32.mrb[0].mxu0
    %v601 = vadd.f32 %v497, %v600
    %v602 = vpop.f32.mrb[0].mxu0
    %603 = vmatprep.mubr.f32.mxu0 0.0
    %604 = vmatmul.mubr.f32.gmra.mrb[0].mxu0 %v475
    %v605 = vpop.f32.mrb[0].mxu0
    %v606 = vadd.f32 %v497, %v605
    %v607 = vpop.f32.mrb[0].mxu0
    %608 = vdwg.mxu0
    %609 = vst [vmem:[#allocation16] sm:$0xff] %v566
    %610 = vst [vmem:[#allocation16 + $0x8] sm:$0xff] %v571
    %611 = vst [vmem:[#allocation16 + $0x10] sm:$0xff] %v576
    %612 = vst [vmem:[#allocation16 + $0x18] sm:$0xff] %v581
    %613 = vst [vmem:[#allocation16 + $0x20] sm:$0xff] %v586
    %614 = vst [vmem:[#allocation16 + $0x28] sm:$0xff] %v591
    %615 = vst [vmem:[#allocation16 + $0x30] sm:$0xff] %v596
    %616 = vst [vmem:[#allocation16 + $0x38] sm:$0xff] %v601
    %617 = vst [vmem:[#allocation16 + $0x40] sm:$0xff] %v606
    // Predicated region
    $region66: #{tpu_custom_call.1} parent=1 // pred_check
      _
    $region67: #{tpu_custom_call.1} parent=1 // pred_check_branch
      %619 = sbr.rel (0) target = $region69
    $region68: #{tpu_custom_call.1} parent=1 // pred_region
      %s621 = ssub.s32 1152, 1152
      %622 = vsyncadd [#allocation4], %s621
      %s623 = sshll.u32 [#allocation16], 4
      %s624 = int_to_ptr.vmem [resolvable:$true] %s623
      %629 = dma.vmem_to_hbm [thread:$0]  %s624, 1152, %s8, [#allocation4], 128, 128, 8
    $region69: #{tpu_custom_call.1} parent=1 // pred_fallthru
      _
    // Predicated region
    $region70: #{tpu_custom_call.1} parent=1 // pred_check
      _
    $region71: #{tpu_custom_call.1} parent=1 // pred_check_branch
      %631 = sbr.rel (0) target = $region73
    $region72: #{tpu_custom_call.1} parent=1 // pred_region
      %632 = dma.done [#allocation4], 1152
    $region73: #{tpu_custom_call.1} parent=1 // pred_fallthru
      _
    %633 = vsyncpa [#allocation3], 1
    %634 = vsyncpa [#allocation6], 1
    %635 = vsyncpa [#allocation9], 1
    %636 = vsyncpa [#allocation12], 1
    %637 = vsyncpa [#allocation15], 1
    %638 = vsyncpa [#allocation4], 1

</llo_original>
